<compile_context>
chip_gen: v6e
topology: v6e:2x2x1
jax: 0.10.0
libtpu: 0.0.40
codegen_flags: <defaults>
</compile_context>

<pallas_src>
import functools

import jax
import jax.numpy as jnp
import numpy as np
from jax import lax
from jax.experimental import pallas as pl
from jax.experimental.pallas import tpu as pltpu

LR = 0.1     # LeakyReLU negative slope
EPS = 1e-5   # InstanceNorm2d eps

# 3x3 tap offsets in row-major weight order: tap t = ky*3 + kx, (dy, dx) = (ky-1, kx-1).
TAPS = tuple((dy, dx) for dy in (-1, 0, 1) for dx in (-1, 0, 1))


def _instnorm_lrelu(h, hw):
    """h: (C, H*W) f32. Single-pass InstanceNorm2d (affine=False, biased var) + LeakyReLU."""
    inv_hw = 1.0 / hw
    mean = jnp.sum(h, axis=1, keepdims=True) * inv_hw          # E[x]
    ex2 = jnp.sum(h * h, axis=1, keepdims=True) * inv_hw       # E[x^2]
    var = jnp.maximum(ex2 - mean * mean, 0.0)                  # biased var, clamped
    hn = (h - mean) * lax.rsqrt(var + EPS)
    return jnp.maximum(hn, LR * hn)                            # LeakyReLU, LR in (0,1)


def _gated_conv3x3(x2d, w_fused, masks, hw, w_img):
    """Gated 3x3 'SAME' conv on one lane-dense image via a single im2col matmul.

    x2d:     (Cin, H*W) f32, spatial flattened onto lanes.
    w_fused: (2*Cout, 9*Cin + 1) f32; column t*Cin + c is weight for tap t /
             in-channel c, last column is the bias.
    masks:   (9, H*W) f32; masks[t, s] == 1 iff tap t at output position s reads
             inside the image (zero-padding semantics), else 0.
    Returns (Cout, H*W) f32 gated activations.
    """
    taps = []
    for t, (dy, dx) in enumerate(TAPS):
        d = dy * w_img + dx
        if d == 0:
            taps.append(x2d)
        else:
            # rolled[s] = x2d[(s + d) mod HW]; wrap-around / cross-row lanes are
            # zeroed by the border mask, emulating zero padding.
            rolled = pltpu.roll(x2d, shift=(-d) % hw, axis=1)
            taps.append(rolled * masks[t:t + 1, :])
    # Constant-ones row folds the bias into the matmul (free MXU work).
    taps.append(jnp.ones((1, hw), jnp.float32))
    stack = jnp.concatenate(taps, axis=0)                      # (9*Cin + 1, H*W)

    # One lane-dense MXU matmul per conv: (2*Cout, 9*Cin+1) @ (9*Cin+1, H*W).
    acc = jnp.dot(w_fused, stack, preferred_element_type=jnp.float32)

    cout = acc.shape[0] // 2
    feat = acc[:cout]                                          # sublane split
    gate = acc[cout:]
    return feat * jax.nn.sigmoid(gate)


def convmod_kernel(x_ref, m_ref, w1_ref, w2_ref, o_ref, *, w_img, batch_block):
    # One grid step == `batch_block` independent images.  Everything stays in
    # registers: no padded scratch, no intermediate VMEM stores.
    hw = x_ref.shape[-1]
    masks = m_ref[...].astype(jnp.float32)                     # (9, H*W)
    w1 = w1_ref[...].astype(jnp.float32)                       # (2*Cmid, 9*Cin+1)
    w2 = w2_ref[...].astype(jnp.float32)                       # (2*Cout, 9*Cmid+1)

    for b in range(batch_block):                               # static unroll; images independent
        x2d = x_ref[b].astype(jnp.float32)                     # (Cin, H*W)
        # block 1: GatedConv2d(3x3, pad=1) -> InstanceNorm2d -> LeakyReLU
        h = _instnorm_lrelu(_gated_conv3x3(x2d, w1, masks, hw, w_img), hw)
        # block 2: GatedConv2d(3x3, pad=1) -> InstanceNorm2d -> LeakyReLU
        g = _instnorm_lrelu(_gated_conv3x3(h, w2, masks, hw, w_img), hw)
        o_ref[b] = g.astype(o_ref.dtype)                       # (Cout, H*W) lane-dense store


@functools.partial(jax.jit, static_argnames=("batch_block",))
def convmod_forward(x_nchw, w1, b1, w2, b2, batch_block=None):
    """ConvMod forward.  x_nchw: (N, Cin, H, W) -> (N, Cout, H, W).

    w1: (3, 3, Cin, 2*Cmid)  b1: (2*Cmid,)   [HWIO; PyTorch OIHW pre-permuted]
    w2: (3, 3, Cmid, 2*Cout) b2: (2*Cout,)
    """
    n, cin, hgt, wid = x_nchw.shape
    cmid = w1.shape[-1] // 2
    cout = w2.shape[-1] // 2
    hw = hgt * wid

    if batch_block is None:
        # Keep >=2 parallel grid steps when possible (v7x has 2 TensorCores),
        # packing the rest of the batch into each step to amortize per-step
        # pipeline overhead.  On v5e/v6e (1 TC) extra steps are just overhead.
        batch_block = n // 2 if (n >= 4 and n % 2 == 0) else 1
    assert n % batch_block == 0, "batch must be divisible by batch_block"

    # Free reshape only -- no pad and no transpose over the activation tensor.
    x = x_nchw.reshape(n, cin, hw)

    # Fused im2col weights: (2*C, 9*Cin) with column t*Cin + c = w[ky,kx,c,o],
    # plus the bias as a trailing column (matches the ones row of the tap stack).
    w1f = jnp.concatenate(
        [jnp.transpose(w1, (3, 0, 1, 2)).reshape(2 * cmid, 9 * cin),
         b1.reshape(2 * cmid, 1)], axis=1)                     # (2*Cmid, 9*Cin+1)
    w2f = jnp.concatenate(
        [jnp.transpose(w2, (3, 0, 1, 2)).reshape(2 * cout, 9 * cmid),
         b2.reshape(2 * cout, 1)], axis=1)                     # (2*Cout, 9*Cmid+1)

    # Per-tap border-validity masks over the flattened spatial axis (tiny, shared
    # by every grid step and both convs; fetched into VMEM once).
    s = jnp.arange(hw, dtype=jnp.int32)
    yy = s // wid
    xx = s % wid
    masks = jnp.stack(
        [((yy + dy >= 0) & (yy + dy < hgt) & (xx + dx >= 0) & (xx + dx < wid)
          ).astype(jnp.float32) for dy, dx in TAPS],
        axis=0)                                                # (9, H*W)

    kernel = functools.partial(convmod_kernel, w_img=wid, batch_block=batch_block)

    out = pl.pallas_call(
        kernel,
        out_shape=jax.ShapeDtypeStruct((n, cout, hw), x_nchw.dtype),
        grid_spec=pltpu.PrefetchScalarGridSpec(
            num_scalar_prefetch=0,
            grid=(n // batch_block,),
            in_specs=[
                pl.BlockSpec((batch_block, cin, hw), lambda i: (i, 0, 0)),
                pl.BlockSpec((9, hw), lambda i: (0, 0)),
                pl.BlockSpec((2 * cmid, 9 * cin + 1), lambda i: (0, 0)),
                pl.BlockSpec((2 * cout, 9 * cmid + 1), lambda i: (0, 0)),
            ],
            out_specs=pl.BlockSpec((batch_block, cout, hw), lambda i: (i, 0, 0)),
        ),
        compiler_params=pltpu.CompilerParams(
            dimension_semantics=("parallel",)),
    )(x, masks, w1f, w2f)

    return out.reshape(n, cout, hgt, wid)                      # free reshape back to NCHW


def ref_forward(x_nchw, w1, b1, w2, b2):
    """Pure-JAX reference (lax.conv) for validation."""
    def gated_block(x, w, b):
        y = lax.conv_general_dilated(
            x, w, window_strides=(1, 1), padding="SAME",
            dimension_numbers=("NHWC", "HWIO", "NHWC"))
        y = y + b.reshape(1, 1, 1, -1)
        c = y.shape[-1] // 2
        h = y[..., :c] * jax.nn.sigmoid(y[..., c:])
        mean = jnp.mean(h, axis=(1, 2), keepdims=True)
        var = jnp.mean((h - mean) ** 2, axis=(1, 2), keepdims=True)
        hn = (h - mean) * lax.rsqrt(var + EPS)
        return jnp.where(hn >= 0, hn, LR * hn)

    x = jnp.transpose(x_nchw, (0, 2, 3, 1))
    h = gated_block(x, w1, b1)
    h = gated_block(h, w2, b2)
    return jnp.transpose(h, (0, 3, 1, 2))


if __name__ == "__main__":
    # Small shapes consistent with the module: N=2, Cin=Cmid=Cout=4, H=W=16.
    N, Cin, Cmid, Cout, H, W = 2, 4, 4, 4, 16, 16

    key = jax.random.PRNGKey(0)
    k1, k2, k3, k4, k5 = jax.random.split(key, 5)

    x = jax.random.normal(k1, (N, Cin, H, W), jnp.float32)
    # GatedConv2d weights (PyTorch (2*C, Cin, 3, 3)) stored here as (3, 3, Cin, 2*C).
    w1 = jax.random.normal(k2, (3, 3, Cin, 2 * Cmid), jnp.float32) * 0.2
    b1 = jax.random.normal(k3, (2 * Cmid,), jnp.float32) * 0.05
    w2 = jax.random.normal(k4, (3, 3, Cmid, 2 * Cout), jnp.float32) * 0.2
    b2 = jax.random.normal(k5, (2 * Cout,), jnp.float32) * 0.05

    out = jax.block_until_ready(convmod_forward(x, w1, b1, w2, b2))

    ref = ref_forward(x, w1, b1, w2, b2)
    np.testing.assert_allclose(np.asarray(out), np.asarray(ref),
                               rtol=1e-4, atol=1e-4)
    print("KERNEL_OK")
</pallas_src>

<mosaic_0001>
module attributes {stable_mosaic.version = 11 : i64} {
  func.func @convmod_kernel(%arg0: i32, %arg1: memref<1x4x256xf32, #tpu.memory_space<vmem>>, %arg2: memref<9x256xf32, #tpu.memory_space<vmem>>, %arg3: memref<8x37xf32, #tpu.memory_space<vmem>>, %arg4: memref<8x37xf32, #tpu.memory_space<vmem>>, %arg5: memref<1x4x256xf32, #tpu.memory_space<vmem>>) attributes {dimension_semantics = [#tpu.dimension_semantics<parallel>], iteration_bounds = array<i64: 2>, scalar_prefetch = 0 : i64, scratch_operands = 0 : i64, tpu.core_type = #tpu.core_type<tc>, window_params = [{transform_indices = @transform_0, window_bounds = array<i64: 1, 4, 256>}, {pipeline_mode = #tpu.pipeline_mode<synchronous>, transform_indices = @transform_1, window_bounds = array<i64: 9, 256>}, {pipeline_mode = #tpu.pipeline_mode<synchronous>, transform_indices = @transform_2, window_bounds = array<i64: 8, 37>}, {pipeline_mode = #tpu.pipeline_mode<synchronous>, transform_indices = @transform_3, window_bounds = array<i64: 8, 37>}, {transform_indices = @transform_4, window_bounds = array<i64: 1, 4, 256>}]} {
    %c0 = arith.constant 0 : index
    %c0_0 = arith.constant 0 : index
    %0 = vector.load %arg2[%c0, %c0_0] : memref<9x256xf32, #tpu.memory_space<vmem>>, vector<9x256xf32>
    %c0_1 = arith.constant 0 : index
    %c0_2 = arith.constant 0 : index
    %1 = vector.load %arg3[%c0_1, %c0_2] : memref<8x37xf32, #tpu.memory_space<vmem>>, vector<8x37xf32>
    %c0_3 = arith.constant 0 : index
    %c0_4 = arith.constant 0 : index
    %2 = vector.load %arg4[%c0_3, %c0_4] : memref<8x37xf32, #tpu.memory_space<vmem>>, vector<8x37xf32>
    %c0_5 = arith.constant 0 : index
    %c0_6 = arith.constant 0 : index
    %c0_7 = arith.constant 0 : index
    %3 = vector.load %arg1[%c0_5, %c0_6, %c0_7] : memref<1x4x256xf32, #tpu.memory_space<vmem>>, vector<1x4x256xf32>
    %4 = vector.shape_cast %3 : vector<1x4x256xf32> to vector<4x256xf32>
    %c17_i32 = arith.constant 17 : i32
    %5 = tpu.dynamic_rotate %4 by %c17_i32 dim 1 : vector<4x256xf32>, i32 -> vector<4x256xf32>
    %6 = vector.extract_strided_slice %0 {offsets = [0, 0], sizes = [1, 256], strides = [1, 1]} : vector<9x256xf32> to vector<1x256xf32>
    %7 = vector.broadcast %6 : vector<1x256xf32> to vector<4x256xf32>
    %8 = arith.mulf %5, %7 : vector<4x256xf32>
    %c16_i32 = arith.constant 16 : i32
    %9 = tpu.dynamic_rotate %4 by %c16_i32 dim 1 : vector<4x256xf32>, i32 -> vector<4x256xf32>
    %10 = vector.extract_strided_slice %0 {offsets = [1, 0], sizes = [1, 256], strides = [1, 1]} : vector<9x256xf32> to vector<1x256xf32>
    %11 = vector.broadcast %10 : vector<1x256xf32> to vector<4x256xf32>
    %12 = arith.mulf %9, %11 : vector<4x256xf32>
    %c15_i32 = arith.constant 15 : i32
    %13 = tpu.dynamic_rotate %4 by %c15_i32 dim 1 : vector<4x256xf32>, i32 -> vector<4x256xf32>
    %14 = vector.extract_strided_slice %0 {offsets = [2, 0], sizes = [1, 256], strides = [1, 1]} : vector<9x256xf32> to vector<1x256xf32>
    %15 = vector.broadcast %14 : vector<1x256xf32> to vector<4x256xf32>
    %16 = arith.mulf %13, %15 : vector<4x256xf32>
    %c1_i32 = arith.constant 1 : i32
    %17 = tpu.dynamic_rotate %4 by %c1_i32 dim 1 : vector<4x256xf32>, i32 -> vector<4x256xf32>
    %18 = vector.extract_strided_slice %0 {offsets = [3, 0], sizes = [1, 256], strides = [1, 1]} : vector<9x256xf32> to vector<1x256xf32>
    %19 = vector.broadcast %18 : vector<1x256xf32> to vector<4x256xf32>
    %20 = arith.mulf %17, %19 : vector<4x256xf32>
    %c255_i32 = arith.constant 255 : i32
    %21 = tpu.dynamic_rotate %4 by %c255_i32 dim 1 : vector<4x256xf32>, i32 -> vector<4x256xf32>
    %22 = vector.extract_strided_slice %0 {offsets = [5, 0], sizes = [1, 256], strides = [1, 1]} : vector<9x256xf32> to vector<1x256xf32>
    %23 = vector.broadcast %22 : vector<1x256xf32> to vector<4x256xf32>
    %24 = arith.mulf %21, %23 : vector<4x256xf32>
    %c241_i32 = arith.constant 241 : i32
    %25 = tpu.dynamic_rotate %4 by %c241_i32 dim 1 : vector<4x256xf32>, i32 -> vector<4x256xf32>
    %26 = vector.extract_strided_slice %0 {offsets = [6, 0], sizes = [1, 256], strides = [1, 1]} : vector<9x256xf32> to vector<1x256xf32>
    %27 = vector.broadcast %26 : vector<1x256xf32> to vector<4x256xf32>
    %28 = arith.mulf %25, %27 : vector<4x256xf32>
    %c240_i32 = arith.constant 240 : i32
    %29 = tpu.dynamic_rotate %4 by %c240_i32 dim 1 : vector<4x256xf32>, i32 -> vector<4x256xf32>
    %30 = vector.extract_strided_slice %0 {offsets = [7, 0], sizes = [1, 256], strides = [1, 1]} : vector<9x256xf32> to vector<1x256xf32>
    %31 = vector.broadcast %30 : vector<1x256xf32> to vector<4x256xf32>
    %32 = arith.mulf %29, %31 : vector<4x256xf32>
    %c239_i32 = arith.constant 239 : i32
    %33 = tpu.dynamic_rotate %4 by %c239_i32 dim 1 : vector<4x256xf32>, i32 -> vector<4x256xf32>
    %34 = vector.extract_strided_slice %0 {offsets = [8, 0], sizes = [1, 256], strides = [1, 1]} : vector<9x256xf32> to vector<1x256xf32>
    %35 = vector.broadcast %34 : vector<1x256xf32> to vector<4x256xf32>
    %36 = arith.mulf %33, %35 : vector<4x256xf32>
    %cst = arith.constant 1.000000e+00 : f32
    %37 = vector.broadcast %cst : f32 to vector<1x256xf32>
    %38 = tpu.concatenate %8, %12, %16, %20, %4, %24, %28, %32, %36, %37 in 0 : vector<4x256xf32>, vector<4x256xf32>, vector<4x256xf32>, vector<4x256xf32>, vector<4x256xf32>, vector<4x256xf32>, vector<4x256xf32>, vector<4x256xf32>, vector<4x256xf32>, vector<1x256xf32> -> vector<37x256xf32>
    %cst_8 = arith.constant dense<0.000000e+00> : vector<8x256xf32>
    %39 = tpu.matmul %1, %38, %cst_8 {dimension_numbers = #tpu.dot_dimension_numbers<[1], [0], [0], [1], [0, 0, 1, 1], [], []>} : vector<8x37xf32>, vector<37x256xf32>, vector<8x256xf32> -> vector<8x256xf32>
    %40 = vector.extract_strided_slice %39 {offsets = [0, 0], sizes = [4, 256], strides = [1, 1]} : vector<8x256xf32> to vector<4x256xf32>
    %41 = vector.extract_strided_slice %39 {offsets = [4, 0], sizes = [4, 256], strides = [1, 1]} : vector<8x256xf32> to vector<4x256xf32>
    %42 = arith.negf %41 : vector<4x256xf32>
    %43 = math.exp %42 : vector<4x256xf32>
    %cst_9 = arith.constant 1.000000e+00 : f32
    %44 = vector.broadcast %cst_9 : f32 to vector<4x256xf32>
    %45 = arith.addf %44, %43 : vector<4x256xf32>
    %46 = arith.divf %44, %45 : vector<4x256xf32>
    %47 = arith.mulf %40, %46 : vector<4x256xf32>
    %cst_10 = arith.constant dense<0.000000e+00> : vector<4xf32>
    %48 = vector.multi_reduction <add>, %47, %cst_10 [1] : vector<4x256xf32> to vector<4xf32>
    %49 = vector.shape_cast %48 : vector<4xf32> to vector<4x1xf32>
    %cst_11 = arith.constant 3.906250e-03 : f32
    %50 = vector.broadcast %cst_11 : f32 to vector<4x1xf32>
    %51 = arith.mulf %49, %50 : vector<4x1xf32>
    %52 = arith.mulf %47, %47 : vector<4x256xf32>
    %cst_12 = arith.constant dense<0.000000e+00> : vector<4xf32>
    %53 = vector.multi_reduction <add>, %52, %cst_12 [1] : vector<4x256xf32> to vector<4xf32>
    %54 = vector.shape_cast %53 : vector<4xf32> to vector<4x1xf32>
    %cst_13 = arith.constant 3.906250e-03 : f32
    %55 = vector.broadcast %cst_13 : f32 to vector<4x1xf32>
    %56 = arith.mulf %54, %55 : vector<4x1xf32>
    %57 = arith.mulf %51, %51 : vector<4x1xf32>
    %58 = arith.subf %56, %57 : vector<4x1xf32>
    %cst_14 = arith.constant 0.000000e+00 : f32
    %59 = vector.broadcast %cst_14 : f32 to vector<4x1xf32>
    %60 = arith.maximumf %58, %59 : vector<4x1xf32>
    %61 = vector.broadcast %51 : vector<4x1xf32> to vector<4x256xf32>
    %62 = arith.subf %47, %61 : vector<4x256xf32>
    %cst_15 = arith.constant 9.99999974E-6 : f32
    %63 = vector.broadcast %cst_15 : f32 to vector<4x1xf32>
    %64 = arith.addf %60, %63 : vector<4x1xf32>
    %65 = math.rsqrt %64 : vector<4x1xf32>
    %66 = vector.broadcast %65 : vector<4x1xf32> to vector<4x256xf32>
    %67 = arith.mulf %62, %66 : vector<4x256xf32>
    %cst_16 = arith.constant 1.000000e-01 : f32
    %68 = vector.broadcast %cst_16 : f32 to vector<4x256xf32>
    %69 = arith.mulf %68, %67 : vector<4x256xf32>
    %70 = arith.maximumf %67, %69 : vector<4x256xf32>
    %c17_i32_17 = arith.constant 17 : i32
    %71 = tpu.dynamic_rotate %70 by %c17_i32_17 dim 1 : vector<4x256xf32>, i32 -> vector<4x256xf32>
    %72 = vector.extract_strided_slice %0 {offsets = [0, 0], sizes = [1, 256], strides = [1, 1]} : vector<9x256xf32> to vector<1x256xf32>
    %73 = vector.broadcast %72 : vector<1x256xf32> to vector<4x256xf32>
    %74 = arith.mulf %71, %73 : vector<4x256xf32>
    %c16_i32_18 = arith.constant 16 : i32
    %75 = tpu.dynamic_rotate %70 by %c16_i32_18 dim 1 : vector<4x256xf32>, i32 -> vector<4x256xf32>
    %76 = vector.extract_strided_slice %0 {offsets = [1, 0], sizes = [1, 256], strides = [1, 1]} : vector<9x256xf32> to vector<1x256xf32>
    %77 = vector.broadcast %76 : vector<1x256xf32> to vector<4x256xf32>
    %78 = arith.mulf %75, %77 : vector<4x256xf32>
    %c15_i32_19 = arith.constant 15 : i32
    %79 = tpu.dynamic_rotate %70 by %c15_i32_19 dim 1 : vector<4x256xf32>, i32 -> vector<4x256xf32>
    %80 = vector.extract_strided_slice %0 {offsets = [2, 0], sizes = [1, 256], strides = [1, 1]} : vector<9x256xf32> to vector<1x256xf32>
    %81 = vector.broadcast %80 : vector<1x256xf32> to vector<4x256xf32>
    %82 = arith.mulf %79, %81 : vector<4x256xf32>
    %c1_i32_20 = arith.constant 1 : i32
    %83 = tpu.dynamic_rotate %70 by %c1_i32_20 dim 1 : vector<4x256xf32>, i32 -> vector<4x256xf32>
    %84 = vector.extract_strided_slice %0 {offsets = [3, 0], sizes = [1, 256], strides = [1, 1]} : vector<9x256xf32> to vector<1x256xf32>
    %85 = vector.broadcast %84 : vector<1x256xf32> to vector<4x256xf32>
    %86 = arith.mulf %83, %85 : vector<4x256xf32>
    %c255_i32_21 = arith.constant 255 : i32
    %87 = tpu.dynamic_rotate %70 by %c255_i32_21 dim 1 : vector<4x256xf32>, i32 -> vector<4x256xf32>
    %88 = vector.extract_strided_slice %0 {offsets = [5, 0], sizes = [1, 256], strides = [1, 1]} : vector<9x256xf32> to vector<1x256xf32>
    %89 = vector.broadcast %88 : vector<1x256xf32> to vector<4x256xf32>
    %90 = arith.mulf %87, %89 : vector<4x256xf32>
    %c241_i32_22 = arith.constant 241 : i32
    %91 = tpu.dynamic_rotate %70 by %c241_i32_22 dim 1 : vector<4x256xf32>, i32 -> vector<4x256xf32>
    %92 = vector.extract_strided_slice %0 {offsets = [6, 0], sizes = [1, 256], strides = [1, 1]} : vector<9x256xf32> to vector<1x256xf32>
    %93 = vector.broadcast %92 : vector<1x256xf32> to vector<4x256xf32>
    %94 = arith.mulf %91, %93 : vector<4x256xf32>
    %c240_i32_23 = arith.constant 240 : i32
    %95 = tpu.dynamic_rotate %70 by %c240_i32_23 dim 1 : vector<4x256xf32>, i32 -> vector<4x256xf32>
    %96 = vector.extract_strided_slice %0 {offsets = [7, 0], sizes = [1, 256], strides = [1, 1]} : vector<9x256xf32> to vector<1x256xf32>
    %97 = vector.broadcast %96 : vector<1x256xf32> to vector<4x256xf32>
    %98 = arith.mulf %95, %97 : vector<4x256xf32>
    %c239_i32_24 = arith.constant 239 : i32
    %99 = tpu.dynamic_rotate %70 by %c239_i32_24 dim 1 : vector<4x256xf32>, i32 -> vector<4x256xf32>
    %100 = vector.extract_strided_slice %0 {offsets = [8, 0], sizes = [1, 256], strides = [1, 1]} : vector<9x256xf32> to vector<1x256xf32>
    %101 = vector.broadcast %100 : vector<1x256xf32> to vector<4x256xf32>
    %102 = arith.mulf %99, %101 : vector<4x256xf32>
    %cst_25 = arith.constant 1.000000e+00 : f32
    %103 = vector.broadcast %cst_25 : f32 to vector<1x256xf32>
    %104 = tpu.concatenate %74, %78, %82, %86, %70, %90, %94, %98, %102, %103 in 0 : vector<4x256xf32>, vector<4x256xf32>, vector<4x256xf32>, vector<4x256xf32>, vector<4x256xf32>, vector<4x256xf32>, vector<4x256xf32>, vector<4x256xf32>, vector<4x256xf32>, vector<1x256xf32> -> vector<37x256xf32>
    %cst_26 = arith.constant dense<0.000000e+00> : vector<8x256xf32>
    %105 = tpu.matmul %2, %104, %cst_26 {dimension_numbers = #tpu.dot_dimension_numbers<[1], [0], [0], [1], [0, 0, 1, 1], [], []>} : vector<8x37xf32>, vector<37x256xf32>, vector<8x256xf32> -> vector<8x256xf32>
    %106 = vector.extract_strided_slice %105 {offsets = [0, 0], sizes = [4, 256], strides = [1, 1]} : vector<8x256xf32> to vector<4x256xf32>
    %107 = vector.extract_strided_slice %105 {offsets = [4, 0], sizes = [4, 256], strides = [1, 1]} : vector<8x256xf32> to vector<4x256xf32>
    %108 = arith.negf %107 : vector<4x256xf32>
    %109 = math.exp %108 : vector<4x256xf32>
    %cst_27 = arith.constant 1.000000e+00 : f32
    %110 = vector.broadcast %cst_27 : f32 to vector<4x256xf32>
    %111 = arith.addf %110, %109 : vector<4x256xf32>
    %112 = arith.divf %110, %111 : vector<4x256xf32>
    %113 = arith.mulf %106, %112 : vector<4x256xf32>
    %cst_28 = arith.constant dense<0.000000e+00> : vector<4xf32>
    %114 = vector.multi_reduction <add>, %113, %cst_28 [1] : vector<4x256xf32> to vector<4xf32>
    %115 = vector.shape_cast %114 : vector<4xf32> to vector<4x1xf32>
    %cst_29 = arith.constant 3.906250e-03 : f32
    %116 = vector.broadcast %cst_29 : f32 to vector<4x1xf32>
    %117 = arith.mulf %115, %116 : vector<4x1xf32>
    %118 = arith.mulf %113, %113 : vector<4x256xf32>
    %cst_30 = arith.constant dense<0.000000e+00> : vector<4xf32>
    %119 = vector.multi_reduction <add>, %118, %cst_30 [1] : vector<4x256xf32> to vector<4xf32>
    %120 = vector.shape_cast %119 : vector<4xf32> to vector<4x1xf32>
    %cst_31 = arith.constant 3.906250e-03 : f32
    %121 = vector.broadcast %cst_31 : f32 to vector<4x1xf32>
    %122 = arith.mulf %120, %121 : vector<4x1xf32>
    %123 = arith.mulf %117, %117 : vector<4x1xf32>
    %124 = arith.subf %122, %123 : vector<4x1xf32>
    %cst_32 = arith.constant 0.000000e+00 : f32
    %125 = vector.broadcast %cst_32 : f32 to vector<4x1xf32>
    %126 = arith.maximumf %124, %125 : vector<4x1xf32>
    %127 = vector.broadcast %117 : vector<4x1xf32> to vector<4x256xf32>
    %128 = arith.subf %113, %127 : vector<4x256xf32>
    %cst_33 = arith.constant 9.99999974E-6 : f32
    %129 = vector.broadcast %cst_33 : f32 to vector<4x1xf32>
    %130 = arith.addf %126, %129 : vector<4x1xf32>
    %131 = math.rsqrt %130 : vector<4x1xf32>
    %132 = vector.broadcast %131 : vector<4x1xf32> to vector<4x256xf32>
    %133 = arith.mulf %128, %132 : vector<4x256xf32>
    %cst_34 = arith.constant 1.000000e-01 : f32
    %134 = vector.broadcast %cst_34 : f32 to vector<4x256xf32>
    %135 = arith.mulf %134, %133 : vector<4x256xf32>
    %136 = arith.maximumf %133, %135 : vector<4x256xf32>
    %c0_35 = arith.constant 0 : index
    %c0_36 = arith.constant 0 : index
    %c0_37 = arith.constant 0 : index
    %137 = vector.load %arg5[%c0_35, %c0_36, %c0_37] : memref<1x4x256xf32, #tpu.memory_space<vmem>>, vector<1x4x256xf32>
    %138 = vector.shape_cast %137 : vector<1x4x256xf32> to vector<4x256xf32>
    %139 = vector.shape_cast %136 : vector<4x256xf32> to vector<1x4x256xf32>
    tpu.vector_store %arg5[%c0_35, %c0_36, %c0_37], %139 {strides = array<i32>} : memref<1x4x256xf32, #tpu.memory_space<vmem>>, vector<1x4x256xf32>,
    return
  }
  func.func @transform_0(%arg0: i32) -> (i32, i32, i32) {
    %c0_i32 = arith.constant 0 : i32
    %c0_i32_0 = arith.constant 0 : i32
    %c0_i32_1 = arith.constant 0 : i32
    return %arg0, %c0_i32, %c0_i32_0 : i32, i32, i32
  }
  func.func @transform_1(%arg0: i32) -> (i32, i32) {
    %c0_i32 = arith.constant 0 : i32
    %c0_i32_0 = arith.constant 0 : i32
    %c0_i32_1 = arith.constant 0 : i32
    return %c0_i32, %c0_i32_0 : i32, i32
  }
  func.func @transform_2(%arg0: i32) -> (i32, i32) {
    %c0_i32 = arith.constant 0 : i32
    %c0_i32_0 = arith.constant 0 : i32
    %c0_i32_1 = arith.constant 0 : i32
    return %c0_i32, %c0_i32_0 : i32, i32
  }
  func.func @transform_3(%arg0: i32) -> (i32, i32) {
    %c0_i32 = arith.constant 0 : i32
    %c0_i32_0 = arith.constant 0 : i32
    %c0_i32_1 = arith.constant 0 : i32
    return %c0_i32, %c0_i32_0 : i32, i32
  }
  func.func @transform_4(%arg0: i32) -> (i32, i32, i32) {
    %c0_i32 = arith.constant 0 : i32
    %c0_i32_0 = arith.constant 0 : i32
    %c0_i32_1 = arith.constant 0 : i32
    return %arg0, %c0_i32, %c0_i32_0 : i32, i32, i32
  }
}

</mosaic_0001>

<llo_original>
// kernel: convmod_forward.1
$region0: #{convmod_forward.1}
  #allocation0 [shape = 'u32[]', space=smem, size = 0x4, offset = 0x4, fixed_abs, tag = 'smem constant byte address 0x4 - core index']
  #allocation1 [shape = 'u32[144,128]{1,0:T(1,128)}', space=vmem, size = 0x12000, scoped, tag = 'internal scratch']
  %s0 = inlined_call_operand.vmem [shape: f32[2,4,256], index: 0, kind: input, shape index: {}]
  %s1 = inlined_call_operand.vmem [shape: f32[9,256], index: 1, kind: input, shape index: {}]
  %s2 = inlined_call_operand.vmem [shape: f32[8,37], index: 2, kind: input, shape index: {}]
  %s3 = inlined_call_operand.vmem [shape: f32[8,37], index: 3, kind: input, shape index: {}]
  %s4 = inlined_call_operand.vmem [shape: f32[2,4,256], index: 4, kind: output, shape index: {}]
  %s5 = sld [smem:[#allocation0]]
  $region49: #{convmod_forward.1} parent=0
    _
  %s7 = ssub.s32 1, %s5
  %s8 = scalar_select 0, %s7, %s5
  loop: start=0, step=1, limit=4
  $region2: #{convmod_forward.1} parent=0 // loop_pre_header
    _
  $region3: #{convmod_forward.1} parent=0 // loop_header
    %s10 = sphi 0, %s14
    %p11 = scmp.ge.s32.totalorder %s10, 4
    %s20 = sphi 0, %s22
    %s23 = sphi 0, %s20
    %s24 = sphi 0, %s23
    %s40 = sphi 0, %s24
    %s44 = sphi 0, %s44
    %s46 = sphi 0, %s44
    %s47 = sphi 0, %s46
    %s61 = sphi 0, %s47
    %s65 = sphi 0, %s65
    %s67 = sphi 0, %s65
    %s68 = sphi 0, %s67
    %s82 = sphi 0, %s68
    %s86 = sphi 0, %s86
    %s88 = sphi 0, %s86
    %s89 = sphi 0, %s88
    %s103 = sphi 0, %s89
    %s109 = sphi 0, %s111
    %s112 = sphi 0, %s109
    %s113 = sphi 0, %s112
    %s129 = sphi 0, %s113
  $region4: #{convmod_forward.1} parent=0 // loop_header_branch
    %13 = sbr.rel (%p11) target = $region8
  $region5: #{convmod_forward.1} parent=0 // loop_body
    %s15 = ssub.s32 %s10, 1
    %s16 = ssub.s32 %s10, 2
    %s17 = sadd.s32 %s10, 1
    %s18 = ssub.s32 %s10, %s17
    %p19 = scmp.eq.s32.totalorder %s18, 0
    %s21 = sadd.s32 %s20, 1
    %s22 = scalar_select %p19, %s20, %s21
    %p25 = pneg %p19
    %p26 = scmp.eq.s32.totalorder %s10, 1
    %p27 = por %p25, %p26
    %p28 = scmp.ne.s32.totalorder %s20, %s23
    %p29 = scmp.eq.s32.totalorder %s10, 0
    %p30 = por %p28, %p29
    %p31 = scmp.ne.s32.totalorder %s20, %s23
    %p32 = scmp.eq.s32.totalorder %s15, 1
    %p33 = por %p31, %p32
    %p34 = scmp.ne.s32.totalorder %s23, %s24
    %p35 = scmp.eq.s32.totalorder %s15, 0
    %p36 = por %p34, %p35
    %p37 = scmp.ne.s32.totalorder %s23, %s24
    %p38 = scmp.eq.s32.totalorder %s16, 1
    %p39 = por %p37, %p38
    %p41 = scmp.ne.s32.totalorder %s24, %s40
    %p42 = scmp.eq.s32.totalorder %s16, 0
    %p43 = por %p41, %p42
    %s45 = sadd.s32 %s44, 1
    %p48 = scmp.eq.s32.totalorder %s10, 1
    %p49 = scmp.ne.s32.totalorder %s44, %s46
    %p50 = scmp.eq.s32.totalorder %s10, 0
    %p51 = por %p49, %p50
    %p52 = scmp.ne.s32.totalorder %s44, %s46
    %p53 = scmp.eq.s32.totalorder %s15, 1
    %p54 = por %p52, %p53
    %p55 = scmp.ne.s32.totalorder %s46, %s47
    %p56 = scmp.eq.s32.totalorder %s15, 0
    %p57 = por %p55, %p56
    %p58 = scmp.ne.s32.totalorder %s46, %s47
    %p59 = scmp.eq.s32.totalorder %s16, 1
    %p60 = por %p58, %p59
    %p62 = scmp.ne.s32.totalorder %s47, %s61
    %p63 = scmp.eq.s32.totalorder %s16, 0
    %p64 = por %p62, %p63
    %s66 = sadd.s32 %s65, 1
    %p69 = scmp.eq.s32.totalorder %s10, 1
    %p70 = scmp.ne.s32.totalorder %s65, %s67
    %p71 = scmp.eq.s32.totalorder %s10, 0
    %p72 = por %p70, %p71
    %p73 = scmp.ne.s32.totalorder %s65, %s67
    %p74 = scmp.eq.s32.totalorder %s15, 1
    %p75 = por %p73, %p74
    %p76 = scmp.ne.s32.totalorder %s67, %s68
    %p77 = scmp.eq.s32.totalorder %s15, 0
    %p78 = por %p76, %p77
    %p79 = scmp.ne.s32.totalorder %s67, %s68
    %p80 = scmp.eq.s32.totalorder %s16, 1
    %p81 = por %p79, %p80
    %p83 = scmp.ne.s32.totalorder %s68, %s82
    %p84 = scmp.eq.s32.totalorder %s16, 0
    %p85 = por %p83, %p84
    %s87 = sadd.s32 %s86, 1
    %p90 = scmp.eq.s32.totalorder %s10, 1
    %p91 = scmp.ne.s32.totalorder %s86, %s88
    %p92 = scmp.eq.s32.totalorder %s10, 0
    %p93 = por %p91, %p92
    %p94 = scmp.ne.s32.totalorder %s86, %s88
    %p95 = scmp.eq.s32.totalorder %s15, 1
    %p96 = por %p94, %p95
    %p97 = scmp.ne.s32.totalorder %s88, %s89
    %p98 = scmp.eq.s32.totalorder %s15, 0
    %p99 = por %p97, %p98
    %p100 = scmp.ne.s32.totalorder %s88, %s89
    %p101 = scmp.eq.s32.totalorder %s16, 1
    %p102 = por %p100, %p101
    %p104 = scmp.ne.s32.totalorder %s89, %s103
    %p105 = scmp.eq.s32.totalorder %s16, 0
    %p106 = por %p104, %p105
    %s107 = ssub.s32 %s10, %s17
    %p108 = scmp.eq.s32.totalorder %s107, 0
    %s110 = sadd.s32 %s109, 1
    %s111 = scalar_select %p108, %s109, %s110
    %p114 = pneg %p108
    %p115 = scmp.eq.s32.totalorder %s10, 1
    %p116 = por %p114, %p115
    %p117 = scmp.ne.s32.totalorder %s109, %s112
    %p118 = scmp.eq.s32.totalorder %s10, 0
    %p119 = por %p117, %p118
    %p120 = scmp.ne.s32.totalorder %s109, %s112
    %p121 = scmp.eq.s32.totalorder %s15, 1
    %p122 = por %p120, %p121
    %p123 = scmp.ne.s32.totalorder %s112, %s113
    %p124 = scmp.eq.s32.totalorder %s15, 0
    %p125 = por %p123, %p124
    %p126 = scmp.ne.s32.totalorder %s112, %s113
    %p127 = scmp.eq.s32.totalorder %s16, 1
    %p128 = por %p126, %p127
    %p130 = scmp.ne.s32.totalorder %s113, %s129
    %p131 = scmp.eq.s32.totalorder %s16, 0
    %p132 = por %p130, %p131
    %p133 = scmp.le.s32.totalorder 1, %s10
    %p134 = scmp.lt.s32.totalorder %s10, 3
    %p135 = pnand %p133, %p134
    %p136 = pneg %p135
    // Predicated region
    $region9: #{convmod_forward.1} parent=5 // pred_check
      _
    $region10: #{convmod_forward.1} parent=5 // pred_check_branch
      %138 = sbr.rel (%p135) target = $region12
    $region11: #{convmod_forward.1} parent=5 // pred_region
      %s139 = ssub.s32 %s10, 1
      // Predicated region
      $region13: #{convmod_forward.1} parent=11 // pred_check
        %p140 = pneg %p57
      $region14: #{convmod_forward.1} parent=11 // pred_check_branch
        %142 = sbr.rel (%p140) target = $region16
      $region15: #{convmod_forward.1} parent=11 // pred_region
        _
      $region16: #{convmod_forward.1} parent=11 // pred_fallthru
        _
      // Predicated region
      $region17: #{convmod_forward.1} parent=11 // pred_check
        %p143 = pneg %p78
      $region18: #{convmod_forward.1} parent=11 // pred_check_branch
        %145 = sbr.rel (%p143) target = $region20
      $region19: #{convmod_forward.1} parent=11 // pred_region
        _
      $region20: #{convmod_forward.1} parent=11 // pred_fallthru
        _
      // Predicated region
      $region21: #{convmod_forward.1} parent=11 // pred_check
        %p146 = pneg %p99
      $region22: #{convmod_forward.1} parent=11 // pred_check_branch
        %148 = sbr.rel (%p146) target = $region24
      $region23: #{convmod_forward.1} parent=11 // pred_region
        _
      $region24: #{convmod_forward.1} parent=11 // pred_fallthru
        _
    $region12: #{convmod_forward.1} parent=5 // pred_fallthru
      _
    %p149 = scmp.lt.s32.totalorder %s10, 2
    // Predicated region
    $region25: #{convmod_forward.1} parent=5 // pred_check
      %p150 = pneg %p149
    $region26: #{convmod_forward.1} parent=5 // pred_check_branch
      %152 = sbr.rel (%p150) target = $region28
    $region27: #{convmod_forward.1} parent=5 // pred_region
      // Predicated region
      $region29: #{convmod_forward.1} parent=27 // pred_check
        %p153 = pneg %p30
      $region30: #{convmod_forward.1} parent=27 // pred_check_branch
        %155 = sbr.rel (%p153) target = $region32
      $region31: #{convmod_forward.1} parent=27 // pred_region
        %p156 = scmp.lt.s32.totalorder %s10, 1
        %s157 = scalar_select %p156, %s10, 1
        %s158 = smul.addr %s157, 2
        %s159 = smul.addr %s158, 4
        %s160 = scalar_lea.vmem %s0, %s159
      $region32: #{convmod_forward.1} parent=27 // pred_fallthru
        _
    $region28: #{convmod_forward.1} parent=5 // pred_fallthru
      _
    %p161 = scmp.le.s32.totalorder 1, %s10
    %p162 = scmp.lt.s32.totalorder %s10, 3
    %p163 = pnand %p161, %p162
    %p164 = pneg %p163
    // Predicated region
    $region33: #{convmod_forward.1} parent=5 // pred_check
      _
    $region34: #{convmod_forward.1} parent=5 // pred_check_branch
      %166 = sbr.rel (%p163) target = $region36
    $region35: #{convmod_forward.1} parent=5 // pred_region
      %s167 = ssub.s32 %s10, 1
      %p168 = scmp.lt.s32.totalorder %s15, 1
      %s169 = scalar_select %p168, %s15, 1
      %s170 = smul.addr %s169, 2
      %s171 = smul.addr %s170, 4
      %s172 = scalar_lea.vmem %s0, %s171
      %p173 = pneg %p36
      %p174 = pneg %p33
      %p175 = pneg %p57
      %p176 = pneg %p54
      %p177 = pneg %p78
      %p178 = pneg %p75
      %p179 = pneg %p99
      %p180 = pneg %p96
      %p181 = pneg %p125
      %p182 = pneg %p122
      %p183 = scmp.lt.s32.totalorder %s15, 1
      %s184 = scalar_select %p183, %s15, 1
      %s185 = smul.addr %s184, 2
      %s186 = smul.addr %s185, 4
      %s187 = scalar_lea.vmem %s4, %s186
      %p188 = scmp.lt.s32.totalorder %s15, 1
      %s189 = scalar_select %p188, %s15, 1
      %s190 = smul.addr %s189, 2
      %s191 = smul.addr %s190, 4
      %s192 = scalar_lea.vmem %s0, %s191
      %p193 = scmp.lt.s32.totalorder %s15, 1
      %s194 = scalar_select %p193, %s15, 1
      %s195 = smul.addr %s194, 2
      %s196 = smul.addr %s195, 4
      %s197 = scalar_lea.vmem %s4, %s196
      %v198 = vld [vmem:[%s1] sm:$0xff]
      %v199 = vld [vmem:[%s1 + $0x8] sm:$0xff]
      %v200 = vld [vmem:[%s1 + $0x10] sm:$0x1]
      %v201 = vld [vmem:[%s1 + $0x18] sm:$0x1]
      %v202 = vld [vmem:[%s2] sm:$0xff]
      %v203 = vld [vmem:[%s3] sm:$0xff]
      %v204 = vld [vmem:[%s192] sm:$0xff]
      %v206 = vcombine.high %v204, %v204
      %208 = vrot.lane.b32.xlu0 %v204, 17
      %v209 = vpop.permute.xlu0 %208
      %210 = vrot.lane.b32.xlu0 %v206, 17
      %v211 = vpop.permute.xlu0 %210
      %v212 = vlaneseq
      %v213 = vand.u32 %v212, 127
      %vm214 = vcmp.lt.s32.totalorder %v213, 17
      %v215 = vsel %vm214, %v209, %v211
      %v216 = vsel %vm214, %v211, %v209
      %v217 = vlaneseq
      %v218 = vshrl.u32 %v217, 7
      %v219 = vsub.s32 0, %v218
      %v220 = vrot.slane %v198, %v219
      %v221 = vlaneseq
      %v222 = vshrl.u32 %v221, 7
      %v223 = vsub.s32 0, %v222
      %v224 = vrot.slane %v199, %v223
      %v225 = vmul.f32 %v216, %v220
      %v226 = vmul.f32 %v215, %v224
      %227 = vrot.lane.b32.xlu0 %v204, 16
      %v228 = vpop.permute.xlu0 %227
      %229 = vrot.lane.b32.xlu0 %v206, 16
      %v230 = vpop.permute.xlu0 %229
      %vm231 = vcmp.lt.s32.totalorder %v213, 16
      %v232 = vsel %vm231, %v228, %v230
      %v233 = vsel %vm231, %v230, %v228
      %v234 = vlaneseq
      %v235 = vshrl.u32 %v234, 7
      %v236 = vsub.s32 1, %v235
      %v237 = vrot.slane %v198, %v236
      %v238 = vlaneseq
      %v239 = vshrl.u32 %v238, 7
      %v240 = vsub.s32 1, %v239
      %v241 = vrot.slane %v199, %v240
      %v242 = vmul.f32 %v233, %v237
      %v243 = vmul.f32 %v232, %v241
      %244 = vrot.lane.b32.xlu0 %v204, 15
      %v245 = vpop.permute.xlu0 %244
      %246 = vrot.lane.b32.xlu0 %v206, 15
      %v247 = vpop.permute.xlu0 %246
      %vm248 = vcmp.lt.s32.totalorder %v213, 15
      %v249 = vsel %vm248, %v245, %v247
      %v250 = vsel %vm248, %v247, %v245
      %v251 = vlaneseq
      %v252 = vshrl.u32 %v251, 7
      %v253 = vsub.s32 2, %v252
      %v254 = vrot.slane %v198, %v253
      %v255 = vlaneseq
      %v256 = vshrl.u32 %v255, 7
      %v257 = vsub.s32 2, %v256
      %v258 = vrot.slane %v199, %v257
      %v259 = vmul.f32 %v250, %v254
      %v260 = vmul.f32 %v249, %v258
      %261 = vrot.lane.b32.xlu0 %v204, 1
      %v262 = vpop.permute.xlu0 %261
      %263 = vrot.lane.b32.xlu0 %v206, 1
      %v264 = vpop.permute.xlu0 %263
      %vm265 = vcmp.lt.s32.totalorder %v213, 1
      %v266 = vsel %vm265, %v262, %v264
      %v267 = vsel %vm265, %v264, %v262
      %v268 = vlaneseq
      %v269 = vshrl.u32 %v268, 7
      %v270 = vsub.s32 3, %v269
      %v271 = vrot.slane %v198, %v270
      %v272 = vlaneseq
      %v273 = vshrl.u32 %v272, 7
      %v274 = vsub.s32 3, %v273
      %v275 = vrot.slane %v199, %v274
      %v276 = vmul.f32 %v267, %v271
      %v277 = vmul.f32 %v266, %v275
      %278 = vrot.lane.b32.xlu0 %v204, 127
      %v279 = vpop.permute.xlu0 %278
      %280 = vrot.lane.b32.xlu0 %v206, 127
      %v281 = vpop.permute.xlu0 %280
      %vm282 = vcmp.lt.s32.totalorder %v213, 127
      %v283 = vsel %vm282, %v279, %v281
      %v284 = vsel %vm282, %v281, %v279
      %v285 = vlaneseq
      %v286 = vshrl.u32 %v285, 7
      %v287 = vsub.s32 5, %v286
      %v288 = vrot.slane %v198, %v287
      %v289 = vlaneseq
      %v290 = vshrl.u32 %v289, 7
      %v291 = vsub.s32 5, %v290
      %v292 = vrot.slane %v199, %v291
      %v293 = vmul.f32 %v283, %v288
      %v294 = vmul.f32 %v284, %v292
      %295 = vrot.lane.b32.xlu0 %v204, 113
      %v296 = vpop.permute.xlu0 %295
      %297 = vrot.lane.b32.xlu0 %v206, 113
      %v298 = vpop.permute.xlu0 %297
      %vm299 = vcmp.lt.s32.totalorder %v213, 113
      %v300 = vsel %vm299, %v296, %v298
      %v301 = vsel %vm299, %v298, %v296
      %v302 = vlaneseq
      %v303 = vshrl.u32 %v302, 7
      %v304 = vsub.s32 6, %v303
      %v305 = vrot.slane %v198, %v304
      %v306 = vlaneseq
      %v307 = vshrl.u32 %v306, 7
      %v308 = vsub.s32 6, %v307
      %v309 = vrot.slane %v199, %v308
      %v310 = vmul.f32 %v300, %v305
      %v311 = vmul.f32 %v301, %v309
      %312 = vrot.lane.b32.xlu0 %v204, 112
      %v313 = vpop.permute.xlu0 %312
      %314 = vrot.lane.b32.xlu0 %v206, 112
      %v315 = vpop.permute.xlu0 %314
      %vm316 = vcmp.lt.s32.totalorder %v213, 112
      %v317 = vsel %vm316, %v313, %v315
      %v318 = vsel %vm316, %v315, %v313
      %v319 = vlaneseq
      %v320 = vshrl.u32 %v319, 7
      %v321 = vsub.s32 7, %v320
      %v322 = vrot.slane %v198, %v321
      %v323 = vlaneseq
      %v324 = vshrl.u32 %v323, 7
      %v325 = vsub.s32 7, %v324
      %v326 = vrot.slane %v199, %v325
      %v327 = vmul.f32 %v317, %v322
      %v328 = vmul.f32 %v318, %v326
      %329 = vrot.lane.b32.xlu0 %v204, 111
      %v330 = vpop.permute.xlu0 %329
      %331 = vrot.lane.b32.xlu0 %v206, 111
      %v332 = vpop.permute.xlu0 %331
      %vm333 = vcmp.lt.s32.totalorder %v213, 111
      %v334 = vsel %vm333, %v330, %v332
      %v335 = vsel %vm333, %v332, %v330
      %v336 = vlaneseq
      %v337 = vshrl.u32 %v336, 7
      %v338 = vsub.s32 0, %v337
      %v339 = vrot.slane %v200, %v338
      %v340 = vlaneseq
      %v341 = vshrl.u32 %v340, 7
      %v342 = vsub.s32 0, %v341
      %v343 = vrot.slane %v201, %v342
      %v344 = vmul.f32 %v334, %v339
      %v345 = vmul.f32 %v335, %v343
      %v348 = vrot.slane %v242, 4
      %v349 = vrot.slane %v243, 4
      %v354 = vrot.slane %v276, 4
      %v355 = vrot.slane %v277, 4
      %v360 = vrot.slane %v293, 4
      %v361 = vrot.slane %v294, 4
      %v366 = vrot.slane %v327, 4
      %v367 = vrot.slane %v328, 4
      %vm370 = vcmask 1043456
      %v371 = vsel %vm370, %v225, %v348
      %v372 = vsel %vm370, %v226, %v349
      %v373 = vsel %vm370, %v259, %v354
      %v374 = vsel %vm370, %v260, %v355
      %v375 = vsel %vm370, %v204, %v360
      %v376 = vsel %vm370, %v206, %v361
      %v377 = vsel %vm370, %v310, %v366
      %v378 = vsel %vm370, %v311, %v367
      %v379 = vsel %vm370, %v344, 1.0
      %v380 = vsel %vm370, %v345, 1.0
      %vm381 = vcmask 302080
      %v383 = vsel %vm381, %v202, 0
      %vm385 = vcmask 1044480
      %v387 = vsel %vm385, %v379, 0
      %v390 = vsel %vm385, %v380, 0
      %392 = vmatprep.subr.mxu0 0.0
      %393 = vmatpush1.msra.mxu0 0.0
      %394 = vmatprep.subr.mxu0 0.0
      %395 = vmatpush1.msra.mxu0 0.0
      %396 = vmatprep.subr.mxu0 0.0
      %397 = vmatpush1.msra.mxu0 0.0
      %398 = vmatprep.subr.mxu0 0.0
      %399 = vmatpush1.msra.mxu0 0.0
      %400 = vmatprep.subr.mxu0 0.0
      %401 = vmatpush1.msra.mxu0 0.0
      %402 = vmatprep.subr.mxu0 0.0
      %403 = vmatpush1.msra.mxu0 0.0
      %404 = vmatprep.subr.mxu0 0.0
      %405 = vmatpush1.msra.mxu0 0.0
      %406 = vmatprep.subr.mxu0 0.0
      %407 = vmatpush1.msra.mxu0 0.0
      %408 = vmatprep.subr.mxu0 0.0
      %409 = vmatpush1.msra.mxu0 0.0
      %410 = vmatprep.subr.mxu0 0.0
      %411 = vmatpush1.msra.mxu0 0.0
      %412 = vmatprep.subr.mxu0 0.0
      %413 = vmatpush1.msra.mxu0 0.0
      %414 = vmatprep.subr.mxu0 %v390
      %415 = vmatpush1.msra.mxu0 %v387
      %416 = vmatprep.subr.mxu0 %v378
      %417 = vmatpush1.msra.mxu0 %v377
      %418 = vmatprep.subr.mxu0 %v376
      %419 = vmatpush1.msra.mxu0 %v375
      %420 = vmatprep.subr.mxu0 %v374
      %421 = vmatpush1.msra.mxu0 %v373
      %422 = vmatprep.subr.mxu0 %v372
      %423 = vmatpush1.msra.mxu0 %v371
      %424 = vmatprep.subr.mxu0 0.0
      %425 = vmatpush2.msra.mxu0 0.0
      %426 = vmatprep.subr.mxu0 0.0
      %427 = vmatpush2.msra.mxu0 0.0
      %428 = vmatprep.subr.mxu0 0.0
      %429 = vmatpush2.msra.mxu0 0.0
      %430 = vmatprep.subr.mxu0 0.0
      %431 = vmatpush2.msra.mxu0 0.0
      %432 = vmatprep.subr.mxu0 0.0
      %433 = vmatpush2.msra.mxu0 0.0
      %434 = vmatprep.subr.mxu0 0.0
      %435 = vmatpush2.msra.mxu0 0.0
      %436 = vmatprep.subr.mxu0 0.0
      %437 = vmatpush2.msra.mxu0 0.0
      %438 = vmatprep.subr.mxu0 0.0
      %439 = vmatpush2.msra.mxu0 0.0
      %440 = vmatprep.subr.mxu0 0.0
      %441 = vmatpush2.msra.mxu0 0.0
      %442 = vmatprep.subr.mxu0 0.0
      %443 = vmatpush2.msra.mxu0 0.0
      %444 = vmatprep.subr.mxu0 0.0
      %445 = vmatpush2.msra.mxu0 0.0
      %446 = vmatprep.subr.mxu0 0.0
      %447 = vmatpush2.msra.mxu0 0.0
      %448 = vmatprep.subr.mxu0 0.0
      %449 = vmatpush2.msra.mxu0 0.0
      %450 = vmatprep.subr.mxu0 0.0
      %451 = vmatpush2.msra.mxu0 0.0
      %452 = vmatprep.subr.mxu0 0.0
      %453 = vmatpush2.msra.mxu0 0.0
      %454 = vmatprep.subr.mxu0 0.0
      %455 = vmatpush2.msra.mxu0 0.0
      %456 = vmatprep.mubr.f32.mxu0 0.0
      %457 = vmatmul.mubr.f32.gmra.mxu0 %v383
      %v458 = vpop.f32.mrf.mxu0
      %v459 = vadd.f32 0.0, %v458
      %v460 = vpop.f32.mrf.mxu0
      %v461 = vadd.f32 0.0, %v460
      %462 = vdwg.mxu0
      %v463 = vxor.u32 %v459, 2147483648
      %v464 = vxor.u32 %v461, 2147483648
      %v465 = vmul.f32 %v463, 1.442695
      %v466 = vpow.pop %v465
      %v467 = vmul.f32 %v464, 1.442695
      %v468 = vpow.pop %v467
      %v469 = vadd.f32 %v466, 1.0
      %v470 = vadd.f32 %v468, 1.0
      %v471 = vrcp.pop %v469
      %v472 = vmul.f32 1.0, %v471
      %v473 = vrcp.pop %v470
      %v474 = vmul.f32 1.0, %v473
      %v477 = vrot.slane %v472, 4
      %v478 = vrot.slane %v474, 4
      %v481 = vmul.f32 %v459, %v477
      %v482 = vmul.f32 %v461, %v478
      %v483 = vsel %vm370, %v481, 0.0
      %v484 = vsel %vm370, %v482, 0.0
      %v485 = vadd.f32 %v483, %v484
      %486 = vadd.xlane.f32.xlu0 %v485
      %v487 = vpop.xlane.xlu0 %486
      %v488 = vmul.f32 %v487, 0.00390625
      %v489 = vmul.f32 %v481, %v481
      %v490 = vmul.f32 %v482, %v482
      %v491 = vsel %vm370, %v489, 0.0
      %v492 = vsel %vm370, %v490, 0.0
      %v493 = vadd.f32 %v491, %v492
      %494 = vadd.xlane.f32.xlu0 %v493
      %v495 = vpop.xlane.xlu0 %494
      %v496 = vmul.f32 %v495, 0.00390625
      %v497 = vmul.f32 %v488, %v488
      %v498 = vsub.f32 %v496, %v497
      %v499 = vmax.f32 %v498, 0.0
      %v500 = vsub.f32 %v481, %v488
      %v501 = vsub.f32 %v482, %v488
      %v502 = vadd.f32 %v499, 1e-05
      %v503 = vrsqrt.pop %v502
      %v504 = vmul.f32 %v500, %v503
      %v505 = vmul.f32 %v501, %v503
      %v506 = vmul.f32 %v504, 0.1
      %v507 = vmul.f32 %v505, 0.1
      %v508 = vmax.f32 %v504, %v506
      %v509 = vmax.f32 %v505, %v507
      %510 = vrot.lane.b32.xlu0 %v508, 17
      %v511 = vpop.permute.xlu0 %510
      %512 = vrot.lane.b32.xlu0 %v509, 17
      %v513 = vpop.permute.xlu0 %512
      %v514 = vsel %vm214, %v511, %v513
      %v515 = vsel %vm214, %v513, %v511
      %v516 = vmul.f32 %v515, %v220
      %v517 = vmul.f32 %v514, %v224
      %518 = vrot.lane.b32.xlu0 %v508, 16
      %v519 = vpop.permute.xlu0 %518
      %520 = vrot.lane.b32.xlu0 %v509, 16
      %v521 = vpop.permute.xlu0 %520
      %v522 = vsel %vm231, %v519, %v521
      %v523 = vsel %vm231, %v521, %v519
      %v524 = vmul.f32 %v523, %v237
      %v525 = vmul.f32 %v522, %v241
      %526 = vrot.lane.b32.xlu0 %v508, 15
      %v527 = vpop.permute.xlu0 %526
      %528 = vrot.lane.b32.xlu0 %v509, 15
      %v529 = vpop.permute.xlu0 %528
      %v530 = vsel %vm248, %v527, %v529
      %v531 = vsel %vm248, %v529, %v527
      %v532 = vmul.f32 %v531, %v254
      %v533 = vmul.f32 %v530, %v258
      %534 = vrot.lane.b32.xlu0 %v508, 1
      %v535 = vpop.permute.xlu0 %534
      %536 = vrot.lane.b32.xlu0 %v509, 1
      %v537 = vpop.permute.xlu0 %536
      %v538 = vsel %vm265, %v535, %v537
      %v539 = vsel %vm265, %v537, %v535
      %v540 = vmul.f32 %v539, %v271
      %v541 = vmul.f32 %v538, %v275
      %542 = vrot.lane.b32.xlu0 %v508, 127
      %v543 = vpop.permute.xlu0 %542
      %544 = vrot.lane.b32.xlu0 %v509, 127
      %v545 = vpop.permute.xlu0 %544
      %v546 = vsel %vm282, %v543, %v545
      %v547 = vsel %vm282, %v545, %v543
      %v548 = vmul.f32 %v546, %v288
      %v549 = vmul.f32 %v547, %v292
      %550 = vrot.lane.b32.xlu0 %v508, 113
      %v551 = vpop.permute.xlu0 %550
      %552 = vrot.lane.b32.xlu0 %v509, 113
      %v553 = vpop.permute.xlu0 %552
      %v554 = vsel %vm299, %v551, %v553
      %v555 = vsel %vm299, %v553, %v551
      %v556 = vmul.f32 %v554, %v305
      %v557 = vmul.f32 %v555, %v309
      %558 = vrot.lane.b32.xlu0 %v508, 112
      %v559 = vpop.permute.xlu0 %558
      %560 = vrot.lane.b32.xlu0 %v509, 112
      %v561 = vpop.permute.xlu0 %560
      %v562 = vsel %vm316, %v559, %v561
      %v563 = vsel %vm316, %v561, %v559
      %v564 = vmul.f32 %v562, %v322
      %v565 = vmul.f32 %v563, %v326
      %566 = vrot.lane.b32.xlu0 %v508, 111
      %v567 = vpop.permute.xlu0 %566
      %568 = vrot.lane.b32.xlu0 %v509, 111
      %v569 = vpop.permute.xlu0 %568
      %v570 = vsel %vm333, %v567, %v569
      %v571 = vsel %vm333, %v569, %v567
      %v572 = vmul.f32 %v570, %v339
      %v573 = vmul.f32 %v571, %v343
      %v576 = vrot.slane %v524, 4
      %v577 = vrot.slane %v525, 4
      %v582 = vrot.slane %v540, 4
      %v583 = vrot.slane %v541, 4
      %v588 = vrot.slane %v548, 4
      %v589 = vrot.slane %v549, 4
      %v594 = vrot.slane %v564, 4
      %v595 = vrot.slane %v565, 4
      %v598 = vsel %vm370, %v516, %v576
      %v599 = vsel %vm370, %v517, %v577
      %v600 = vsel %vm370, %v532, %v582
      %v601 = vsel %vm370, %v533, %v583
      %v602 = vsel %vm370, %v508, %v588
      %v603 = vsel %vm370, %v509, %v589
      %v604 = vsel %vm370, %v556, %v594
      %v605 = vsel %vm370, %v557, %v595
      %v606 = vsel %vm370, %v572, 1.0
      %v607 = vsel %vm370, %v573, 1.0
      %v609 = vsel %vm381, %v203, 0
      %v612 = vsel %vm385, %v606, 0
      %v615 = vsel %vm385, %v607, 0
      %617 = vmatprep.subr.mxu0 0.0
      %618 = vmatpush1.msra.mxu0 0.0
      %619 = vmatprep.subr.mxu0 0.0
      %620 = vmatpush1.msra.mxu0 0.0
      %621 = vmatprep.subr.mxu0 0.0
      %622 = vmatpush1.msra.mxu0 0.0
      %623 = vmatprep.subr.mxu0 0.0
      %624 = vmatpush1.msra.mxu0 0.0
      %625 = vmatprep.subr.mxu0 0.0
      %626 = vmatpush1.msra.mxu0 0.0
      %627 = vmatprep.subr.mxu0 0.0
      %628 = vmatpush1.msra.mxu0 0.0
      %629 = vmatprep.subr.mxu0 0.0
      %630 = vmatpush1.msra.mxu0 0.0
      %631 = vmatprep.subr.mxu0 0.0
      %632 = vmatpush1.msra.mxu0 0.0
      %633 = vmatprep.subr.mxu0 0.0
      %634 = vmatpush1.msra.mxu0 0.0
      %635 = vmatprep.subr.mxu0 0.0
      %636 = vmatpush1.msra.mxu0 0.0
      %637 = vmatprep.subr.mxu0 0.0
      %638 = vmatpush1.msra.mxu0 0.0
      %639 = vmatprep.subr.mxu0 %v615
      %640 = vmatpush1.msra.mxu0 %v612
      %641 = vmatprep.subr.mxu0 %v605
      %642 = vmatpush1.msra.mxu0 %v604
      %643 = vmatprep.subr.mxu0 %v603
      %644 = vmatpush1.msra.mxu0 %v602
      %645 = vmatprep.subr.mxu0 %v601
      %646 = vmatpush1.msra.mxu0 %v600
      %647 = vmatprep.subr.mxu0 %v599
      %648 = vmatpush1.msra.mxu0 %v598
      %649 = vmatprep.subr.mxu0 0.0
      %650 = vmatpush2.msra.mxu0 0.0
      %651 = vmatprep.subr.mxu0 0.0
      %652 = vmatpush2.msra.mxu0 0.0
      %653 = vmatprep.subr.mxu0 0.0
      %654 = vmatpush2.msra.mxu0 0.0
      %655 = vmatprep.subr.mxu0 0.0
      %656 = vmatpush2.msra.mxu0 0.0
      %657 = vmatprep.subr.mxu0 0.0
      %658 = vmatpush2.msra.mxu0 0.0
      %659 = vmatprep.subr.mxu0 0.0
      %660 = vmatpush2.msra.mxu0 0.0
      %661 = vmatprep.subr.mxu0 0.0
      %662 = vmatpush2.msra.mxu0 0.0
      %663 = vmatprep.subr.mxu0 0.0
      %664 = vmatpush2.msra.mxu0 0.0
      %665 = vmatprep.subr.mxu0 0.0
      %666 = vmatpush2.msra.mxu0 0.0
      %667 = vmatprep.subr.mxu0 0.0
      %668 = vmatpush2.msra.mxu0 0.0
      %669 = vmatprep.subr.mxu0 0.0
      %670 = vmatpush2.msra.mxu0 0.0
      %671 = vmatprep.subr.mxu0 0.0
      %672 = vmatpush2.msra.mxu0 0.0
      %673 = vmatprep.subr.mxu0 0.0
      %674 = vmatpush2.msra.mxu0 0.0
      %675 = vmatprep.subr.mxu0 0.0
      %676 = vmatpush2.msra.mxu0 0.0
      %677 = vmatprep.subr.mxu0 0.0
      %678 = vmatpush2.msra.mxu0 0.0
      %679 = vmatprep.subr.mxu0 0.0
      %680 = vmatpush2.msra.mxu0 0.0
      %681 = vmatprep.mubr.f32.mxu0 0.0
      %682 = vmatmul.mubr.f32.gmra.mxu0 %v609
      %v683 = vpop.f32.mrf.mxu0
      %v684 = vadd.f32 0.0, %v683
      %v685 = vpop.f32.mrf.mxu0
      %v686 = vadd.f32 0.0, %v685
      %687 = vdwg.mxu0
      %v688 = vxor.u32 %v684, 2147483648
      %v689 = vxor.u32 %v686, 2147483648
      %v690 = vmul.f32 %v688, 1.442695
      %v691 = vpow.pop %v690
      %v692 = vmul.f32 %v689, 1.442695
      %v693 = vpow.pop %v692
      %v694 = vadd.f32 %v691, 1.0
      %v695 = vadd.f32 %v693, 1.0
      %v696 = vrcp.pop %v694
      %v697 = vmul.f32 1.0, %v696
      %v698 = vrcp.pop %v695
      %v699 = vmul.f32 1.0, %v698
      %v702 = vrot.slane %v697, 4
      %v703 = vrot.slane %v699, 4
      %v706 = vmul.f32 %v684, %v702
      %v707 = vmul.f32 %v686, %v703
      %v708 = vsel %vm370, %v706, 0.0
      %v709 = vsel %vm370, %v707, 0.0
      %v710 = vadd.f32 %v708, %v709
      %711 = vadd.xlane.f32.xlu0 %v710
      %v712 = vpop.xlane.xlu0 %711
      %v713 = vmul.f32 %v712, 0.00390625
      %v714 = vmul.f32 %v706, %v706
      %v715 = vmul.f32 %v707, %v707
      %v716 = vsel %vm370, %v714, 0.0
      %v717 = vsel %vm370, %v715, 0.0
      %v718 = vadd.f32 %v716, %v717
      %719 = vadd.xlane.f32.xlu0 %v718
      %v720 = vpop.xlane.xlu0 %719
      %v721 = vmul.f32 %v720, 0.00390625
      %v722 = vmul.f32 %v713, %v713
      %v723 = vsub.f32 %v721, %v722
      %v724 = vmax.f32 %v723, 0.0
      %v725 = vsub.f32 %v706, %v713
      %v726 = vsub.f32 %v707, %v713
      %v727 = vadd.f32 %v724, 1e-05
      %v728 = vrsqrt.pop %v727
      %v729 = vmul.f32 %v725, %v728
      %v730 = vmul.f32 %v726, %v728
      %v731 = vmul.f32 %v729, 0.1
      %v732 = vmul.f32 %v730, 0.1
      %v733 = vmax.f32 %v729, %v731
      %v734 = vmax.f32 %v730, %v732
      %v737 = vcombine.low %v733, %v734
      %739 = vst [vmem:[%s197] sm:$0xff] %v737
      %p740 = scmp.lt.s32.totalorder %s15, 1
      %s741 = scalar_select %p740, %s15, 1
      %s742 = smul.addr %s741, 2
      %s743 = smul.addr %s742, 4
      %s744 = scalar_lea.vmem %s4, %s743
      // Predicated region
      $region37: #{convmod_forward.1} parent=35 // pred_check
        %p745 = pneg %p122
      $region38: #{convmod_forward.1} parent=35 // pred_check_branch
        %747 = sbr.rel (%p745) target = $region40
      $region39: #{convmod_forward.1} parent=35 // pred_region
        _
      $region40: #{convmod_forward.1} parent=35 // pred_fallthru
        _
    $region36: #{convmod_forward.1} parent=5 // pred_fallthru
      _
    %p748 = scmp.le.s32.totalorder 2, %s10
    // Predicated region
    $region41: #{convmod_forward.1} parent=5 // pred_check
      %p749 = pneg %p748
    $region42: #{convmod_forward.1} parent=5 // pred_check_branch
      %751 = sbr.rel (%p749) target = $region44
    $region43: #{convmod_forward.1} parent=5 // pred_region
      %s752 = ssub.s32 %s10, 2
      // Predicated region
      $region45: #{convmod_forward.1} parent=43 // pred_check
        %p753 = pneg %p128
      $region46: #{convmod_forward.1} parent=43 // pred_check_branch
        %755 = sbr.rel (%p753) target = $region48
      $region47: #{convmod_forward.1} parent=43 // pred_region
        %p756 = scmp.lt.s32.totalorder %s16, 1
        %s757 = scalar_select %p756, %s16, 1
        %s758 = smul.addr %s757, 2
        %s759 = smul.addr %s758, 4
        %s760 = scalar_lea.vmem %s4, %s759
      $region48: #{convmod_forward.1} parent=43 // pred_fallthru
        _
    $region44: #{convmod_forward.1} parent=5 // pred_fallthru
      _
  $region6: #{convmod_forward.1} parent=0 // loop_footer
    %s14 = sadd.s32 1, %s10
  $region7: #{convmod_forward.1} parent=0 // loop_footer_branch
    %9 = sbr.rel target = $region3
  $region8: #{convmod_forward.1} parent=0 // loop_exit
    _

</llo_original>
